<compile_context>
chip_gen: v7x
topology: tpu7x:2x2x1
jax: 0.10.0
libtpu: 0.0.40
codegen_flags: <defaults>
</compile_context>

<pallas_src>
import math

import jax
import jax.numpy as jnp
from jax.experimental import pallas as pl
from jax.experimental.pallas import tpu as pltpu


_VMEM_LIMIT_BYTES = 48 * 1024 * 1024   # explicit limit: fits under v7x's 64 MiB
_VMEM_BUDGET_BYTES = 40 * 1024 * 1024  # tile-planning target (headroom under limit)


def _gelu_new(x):
    # GPT-2 / "new" GELU (tanh approximation), matching transformer_lens gelu_new.
    c = math.sqrt(2.0 / math.pi)
    return 0.5 * x * (1.0 + jnp.tanh(c * (x + 0.044715 * x * x * x)))


def _round_up(n, m):
    return ((n + m - 1) // m) * m


def _make_mlp_kernel(resident: bool, tk: int):
    """Kernel over grid (row tiles, d_mlp chunks).

    resident=True  -> w_in/b_in/w_out refs hold the FULL (padded) weights and
                      are sliced at k*tk inside the kernel (weights DMA'd once).
    resident=False -> w_in/b_in/w_out refs hold the current (.., tk) chunk
                      (streamed per k step via BlockSpec).
    """

    def kernel(x_ref, w_in_ref, b_in_ref, w_out_ref, b_out_ref, o_ref, acc_ref):
        k = pl.program_id(1)

        @pl.when(k == 0)
        def _():
            # Fold b_out into the accumulator init (removes an epilogue add).
            acc_ref[...] = jnp.broadcast_to(
                b_out_ref[...].astype(jnp.float32), acc_ref.shape)

        if resident:
            off = pl.multiple_of(k * tk, 128)            # tk is a multiple of 128
            w_in_blk = w_in_ref[:, pl.ds(off, tk)]
            b_in_blk = b_in_ref[:, pl.ds(off, tk)]
            w_out_blk = w_out_ref[pl.ds(off, tk), :]
        else:
            w_in_blk = w_in_ref[...]
            b_in_blk = b_in_ref[...]
            w_out_blk = w_out_ref[...]

        # First projection for this d_mlp chunk (MXU, f32 accumulation). Operands
        # stay in their input dtype (bf16 weights run at full MXU rate).
        pre = jnp.dot(x_ref[...], w_in_blk, preferred_element_type=jnp.float32)
        pre = pre + b_in_blk.astype(jnp.float32)          # (tm, tk) + (1, tk)

        # Nonlinearity in f32 (VPU/EUP); v5e has no bf16 elementwise path.
        post = _gelu_new(pre)

        # Partial second projection, accumulated into the resident f32 scratch.
        acc_ref[...] += jnp.dot(post.astype(w_out_blk.dtype), w_out_blk,
                                preferred_element_type=jnp.float32)

        @pl.when(k == pl.num_programs(1) - 1)
        def _():
            o_ref[...] = acc_ref[...].astype(o_ref.dtype)

    return kernel


def mlp_pallas(x, w_in, b_in, w_out, b_out, *, tm=1024, tk=512, resident=None):
    """x: [batch, position, d_model] -> [batch, position, d_model].

    tm: row tile target (auto-clamped to the row count, split for megacore,
        and shrunk if VMEM requires it).
    tk: d_mlp chunk target (rounded to a multiple of 128; d_mlp is zero-padded
        so the chunk divides exactly -- numerically exact since padded W_out
        rows are zero).
    resident: force/deny VMEM-resident weights (None = auto by VMEM budget).

    For peak MXU throughput on v6e/v7x, pass W_in / W_out (and ideally x) in
    bfloat16; x is cast to the weight dtype, accumulation is always float32.
    """
    batch, pos, d_model = x.shape
    d_mlp = w_in.shape[1]
    rows = batch * pos
    out_dtype = x.dtype

    # Single matmul dtype (keeps the MXU on the fast path; bf16 halves DMA bytes).
    cdt = w_in.dtype
    assert w_out.dtype == cdt, "W_in and W_out must share a dtype"
    x2 = x.reshape(rows, d_model)
    if x2.dtype != cdt:
        x2 = x2.astype(cdt)

    # d_mlp chunk (multiple of 128); pad d_mlp so it divides exactly.
    tk_eff = _round_up(max(128, min(tk, _round_up(d_mlp, 128))), 128)

    # Row tile: clamp to the (8-aligned) row count.
    rows8 = _round_up(rows, 8)
    tm_eff = min(tm, rows8)
    # Megacore (v7x): if rows are large but would give a single row tile, split
    # so both TensorCores receive work along the "parallel" row axis.
    if tm_eff >= rows8 >= 512:
        tm_eff = _round_up((rows8 + 1) // 2, 128)

    itm_x = jnp.dtype(cdt).itemsize
    itm_w = jnp.dtype(cdt).itemsize
    itm_o = jnp.dtype(out_dtype).itemsize

    def _resident_bytes(tm_, dmp_):
        # Conservative: assume weights are still double-buffered.
        wb = (d_model * dmp_ * 2 + dmp_ + d_model) * itm_w
        return (2 * wb + 2 * tm_ * d_model * itm_x
                + 2 * tm_ * d_model * itm_o + tm_ * d_model * 4)

    def _streaming_bytes(tm_, tk_):
        return (2 * tm_ * d_model * itm_x
                + 2 * (d_model * tk_ * 2 + tk_ + d_model) * itm_w
                + 2 * tm_ * d_model * itm_o + tm_ * d_model * 4)

    if resident is None:
        resident = _resident_bytes(tm_eff, _round_up(d_mlp, tk_eff)) <= _VMEM_BUDGET_BYTES
    if not resident:
        # Re-budget tiles for the streaming plan (v7x has only 64 MiB VMEM).
        while _streaming_bytes(tm_eff, tk_eff) > _VMEM_BUDGET_BYTES and tm_eff > 256:
            tm_eff = max(256, _round_up(tm_eff // 2, 128))
        while _streaming_bytes(tm_eff, tk_eff) > _VMEM_BUDGET_BYTES and tk_eff > 256:
            tk_eff = max(256, tk_eff // 2)

    tm_eff = min(tm_eff, rows8)
    d_mlp_pad = _round_up(d_mlp, tk_eff)
    rows_pad = _round_up(rows, tm_eff)

    # Zero-pad rows (sliced off at the end) and d_mlp (exact: padded W_out rows = 0).
    if rows_pad != rows:
        x2 = jnp.pad(x2, ((0, rows_pad - rows), (0, 0)))
    w_in_p, b_in_p, w_out_p = w_in, b_in, w_out
    pad_k = d_mlp_pad - d_mlp
    if pad_k:
        w_in_p = jnp.pad(w_in, ((0, 0), (0, pad_k)))
        b_in_p = jnp.pad(b_in, (0, pad_k))
        w_out_p = jnp.pad(w_out, ((0, pad_k), (0, 0)))
    b_in2 = b_in_p.reshape(1, d_mlp_pad)
    b_out2 = b_out.reshape(1, d_model)

    num_row_tiles = rows_pad // tm_eff
    num_k = d_mlp_pad // tk_eff
    grid = (num_row_tiles, num_k)

    if resident:
        # Constant index_map -> weights DMA'd from HBM exactly once per call.
        w_in_spec = pl.BlockSpec((d_model, d_mlp_pad), lambda i, k: (0, 0))
        b_in_spec = pl.BlockSpec((1, d_mlp_pad), lambda i, k: (0, 0))
        w_out_spec = pl.BlockSpec((d_mlp_pad, d_model), lambda i, k: (0, 0))
        weight_streams = 1
    else:
        # Streamed per k step; re-fetched once per row tile (amortized by big tm).
        w_in_spec = pl.BlockSpec((d_model, tk_eff), lambda i, k: (0, k))
        b_in_spec = pl.BlockSpec((1, tk_eff), lambda i, k: (0, k))
        w_out_spec = pl.BlockSpec((tk_eff, d_model), lambda i, k: (k, 0))
        weight_streams = num_row_tiles

    w_bytes = ((w_in_p.size + w_out_p.size) * itm_w
               + b_in2.size * b_in2.dtype.itemsize
               + b_out2.size * b_out2.dtype.itemsize)
    cost = pl.CostEstimate(
        flops=4 * rows_pad * d_model * d_mlp_pad,             # two matmuls
        transcendentals=rows_pad * d_mlp_pad,                 # tanh in gelu_new
        bytes_accessed=(rows_pad * d_model * itm_x            # x read once
                        + rows_pad * d_model * itm_o          # output written once
                        + weight_streams * w_bytes),          # actual weight traffic
    )

    out2 = pl.pallas_call(
        _make_mlp_kernel(resident, tk_eff),
        out_shape=jax.ShapeDtypeStruct((rows_pad, d_model), out_dtype),
        grid_spec=pltpu.PrefetchScalarGridSpec(
            num_scalar_prefetch=0,
            grid=grid,
            in_specs=[
                pl.BlockSpec((tm_eff, d_model), lambda i, k: (i, 0)),  # x rows (const over k)
                w_in_spec,
                b_in_spec,
                w_out_spec,
                pl.BlockSpec((1, d_model), lambda i, k: (0, 0)),       # b_out (const)
            ],
            out_specs=pl.BlockSpec((tm_eff, d_model), lambda i, k: (i, 0)),
            scratch_shapes=[pltpu.VMEM((tm_eff, d_model), jnp.float32)],
        ),
        compiler_params=pltpu.CompilerParams(
            dimension_semantics=("parallel", "arbitrary"),
            vmem_limit_bytes=_VMEM_LIMIT_BYTES,
        ),
        cost_estimate=cost,
    )(x2, w_in_p, b_in2, w_out_p, b_out2)

    return out2[:rows].reshape(batch, pos, d_model)


def mlp_reference(x, w_in, b_in, w_out, b_out):
    pre = jnp.einsum("bpd,dm->bpm", x, w_in) + b_in
    post = _gelu_new(pre)
    return jnp.einsum("bpm,md->bpd", post, w_out) + b_out


if __name__ == "__main__":
    # Small shapes consistent with the module (d_mlp = 4 * d_model, like 768 -> 3072).
    # pos=9 makes batch*position ragged to exercise the row-padding path.
    batch, pos = 2, 9
    d_model, d_mlp = 128, 512
    init_range = 0.02

    key = jax.random.PRNGKey(0)
    k_x, k_win, k_wout, k_bin, k_bout = jax.random.split(key, 5)

    x = jax.random.normal(k_x, (batch, pos, d_model), dtype=jnp.float32)
    W_in = init_range * jax.random.normal(k_win, (d_model, d_mlp), dtype=jnp.float32)
    b_in = 0.01 * jax.random.normal(k_bin, (d_mlp,), dtype=jnp.float32)
    W_out = init_range * jax.random.normal(k_wout, (d_mlp, d_model), dtype=jnp.float32)
    b_out = 0.01 * jax.random.normal(k_bout, (d_model,), dtype=jnp.float32)

    ref = mlp_reference(x, W_in, b_in, W_out, b_out)

    # 1) Resident-weights path, multi-step K accumulation (tk=256 -> 2 chunks).
    out = jax.block_until_ready(mlp_pallas(x, W_in, b_in, W_out, b_out, tk=256))
    assert out.shape == (batch, pos, d_model)
    assert jnp.allclose(out, ref, atol=1e-5, rtol=1e-5), "mismatch (resident)"

    # 2) d_mlp-padding path: tk=384 does not divide 512 -> d_mlp zero-padded to 768.
    out2 = jax.block_until_ready(mlp_pallas(x, W_in, b_in, W_out, b_out, tk=384))
    assert jnp.allclose(out2, ref, atol=1e-5, rtol=1e-5), "mismatch (padded d_mlp)"

    # 3) Streaming-weights fallback path (forced) for coverage.
    out3 = jax.block_until_ready(
        mlp_pallas(x, W_in, b_in, W_out, b_out, tk=256, resident=False))
    assert jnp.allclose(out3, ref, atol=1e-5, rtol=1e-5), "mismatch (streaming)"

    print("KERNEL_OK")
</pallas_src>

<mosaic_0001>
module attributes {stable_mosaic.version = 11 : i64} {
  func.func @kernel(%arg0: i32, %arg1: i32, %arg2: memref<24x128xf32, #tpu.memory_space<vmem>>, %arg3: memref<128x512xf32, #tpu.memory_space<vmem>>, %arg4: memref<1x512xf32, #tpu.memory_space<vmem>>, %arg5: memref<512x128xf32, #tpu.memory_space<vmem>>, %arg6: memref<1x128xf32, #tpu.memory_space<vmem>>, %arg7: memref<24x128xf32, #tpu.memory_space<vmem>>, %arg8: memref<24x128xf32, #tpu.memory_space<vmem>>) attributes {dimension_semantics = [#tpu.dimension_semantics<parallel>, #tpu.dimension_semantics<arbitrary>], iteration_bounds = array<i64: 1, 2>, scalar_prefetch = 0 : i64, scratch_operands = 1 : i64, tpu.core_type = #tpu.core_type<tc>, window_params = [{transform_indices = @transform_0, window_bounds = array<i64: 24, 128>}, {pipeline_mode = #tpu.pipeline_mode<synchronous>, transform_indices = @transform_1, window_bounds = array<i64: 128, 512>}, {pipeline_mode = #tpu.pipeline_mode<synchronous>, transform_indices = @transform_2, window_bounds = array<i64: 1, 512>}, {pipeline_mode = #tpu.pipeline_mode<synchronous>, transform_indices = @transform_3, window_bounds = array<i64: 512, 128>}, {pipeline_mode = #tpu.pipeline_mode<synchronous>, transform_indices = @transform_4, window_bounds = array<i64: 1, 128>}, {transform_indices = @transform_5, window_bounds = array<i64: 24, 128>}]} {
    %c0_i32 = arith.constant 0 : i32
    %0 = arith.cmpi eq, %arg1, %c0_i32 : i32
    %1 = arith.extui %0 : i1 to i32
    %c0_i32_0 = arith.constant 0 : i32
    %2 = arith.cmpi ne, %1, %c0_i32_0 : i32
    scf.if %2 {
      %c0_15 = arith.constant 0 : index
      %c0_16 = arith.constant 0 : index
      %35 = vector.load %arg6[%c0_15, %c0_16] : memref<1x128xf32, #tpu.memory_space<vmem>>, vector<1x128xf32>
      %36 = vector.shape_cast %35 : vector<1x128xf32> to vector<1x128xf32>
      %37 = vector.broadcast %36 : vector<1x128xf32> to vector<24x128xf32>
      %c0_17 = arith.constant 0 : index
      %c0_18 = arith.constant 0 : index
      %38 = vector.load %arg8[%c0_17, %c0_18] : memref<24x128xf32, #tpu.memory_space<vmem>>, vector<24x128xf32>
      tpu.vector_store %arg8[%c0_17, %c0_18], %37 {strides = array<i32>} : memref<24x128xf32, #tpu.memory_space<vmem>>, vector<24x128xf32>,
    } else {
    }
    %c256_i32 = arith.constant 256 : i32
    %3 = arith.muli %arg1, %c256_i32 : i32
    %4 = tpu.assume_multiple %3, 128 : i32
    %c0 = arith.constant 0 : index
    %5 = arith.index_cast %4 : i32 to index
    %6 = vector.load %arg3[%c0, %5] : memref<128x512xf32, #tpu.memory_space<vmem>>, vector<128x256xf32>
    %c0_1 = arith.constant 0 : index
    %7 = arith.index_cast %4 : i32 to index
    %8 = vector.load %arg4[%c0_1, %7] : memref<1x512xf32, #tpu.memory_space<vmem>>, vector<1x256xf32>
    %9 = arith.index_cast %4 : i32 to index
    %c0_2 = arith.constant 0 : index
    %10 = vector.load %arg5[%9, %c0_2] : memref<512x128xf32, #tpu.memory_space<vmem>>, vector<256x128xf32>
    %c0_3 = arith.constant 0 : index
    %c0_4 = arith.constant 0 : index
    %11 = vector.load %arg2[%c0_3, %c0_4] : memref<24x128xf32, #tpu.memory_space<vmem>>, vector<24x128xf32>
    %cst = arith.constant dense<0.000000e+00> : vector<24x256xf32>
    %12 = tpu.matmul %11, %6, %cst {dimension_numbers = #tpu.dot_dimension_numbers<[1], [0], [0], [1], [0, 0, 1, 1], [], []>} : vector<24x128xf32>, vector<128x256xf32>, vector<24x256xf32> -> vector<24x256xf32>
    %13 = vector.broadcast %8 : vector<1x256xf32> to vector<24x256xf32>
    %14 = arith.addf %12, %13 : vector<24x256xf32>
    %cst_5 = arith.constant 5.000000e-01 : f32
    %15 = vector.broadcast %cst_5 : f32 to vector<24x256xf32>
    %16 = arith.mulf %15, %14 : vector<24x256xf32>
    %cst_6 = arith.constant 4.471500e-02 : f32
    %17 = vector.broadcast %cst_6 : f32 to vector<24x256xf32>
    %18 = arith.mulf %17, %14 : vector<24x256xf32>
    %19 = arith.mulf %18, %14 : vector<24x256xf32>
    %20 = arith.mulf %19, %14 : vector<24x256xf32>
    %21 = arith.addf %14, %20 : vector<24x256xf32>
    %cst_7 = arith.constant 0.797884583 : f32
    %22 = vector.broadcast %cst_7 : f32 to vector<24x256xf32>
    %23 = arith.mulf %22, %21 : vector<24x256xf32>
    %24 = math.tanh %23 : vector<24x256xf32>
    %cst_8 = arith.constant 1.000000e+00 : f32
    %25 = vector.broadcast %cst_8 : f32 to vector<24x256xf32>
    %26 = arith.addf %25, %24 : vector<24x256xf32>
    %27 = arith.mulf %16, %26 : vector<24x256xf32>
    %c0_9 = arith.constant 0 : index
    %c0_10 = arith.constant 0 : index
    %28 = vector.load %arg8[%c0_9, %c0_10] : memref<24x128xf32, #tpu.memory_space<vmem>>, vector<24x128xf32>
    %cst_11 = arith.constant dense<0.000000e+00> : vector<24x128xf32>
    %29 = tpu.matmul %27, %10, %cst_11 {dimension_numbers = #tpu.dot_dimension_numbers<[1], [0], [0], [1], [0, 0, 1, 1], [], []>} : vector<24x256xf32>, vector<256x128xf32>, vector<24x128xf32> -> vector<24x128xf32>
    %30 = arith.addf %28, %29 : vector<24x128xf32>
    %c0_12 = arith.constant 0 : index
    %c0_13 = arith.constant 0 : index
    %31 = vector.load %arg8[%c0_12, %c0_13] : memref<24x128xf32, #tpu.memory_space<vmem>>, vector<24x128xf32>
    tpu.vector_store %arg8[%c0_12, %c0_13], %30 {strides = array<i32>} : memref<24x128xf32, #tpu.memory_space<vmem>>, vector<24x128xf32>,
    %c1_i32 = arith.constant 1 : i32
    %32 = arith.cmpi eq, %arg1, %c1_i32 : i32
    %33 = arith.extui %32 : i1 to i32
    %c0_i32_14 = arith.constant 0 : i32
    %34 = arith.cmpi ne, %33, %c0_i32_14 : i32
    scf.if %34 {
      %c0_15 = arith.constant 0 : index
      %c0_16 = arith.constant 0 : index
      %35 = vector.load %arg8[%c0_15, %c0_16] : memref<24x128xf32, #tpu.memory_space<vmem>>, vector<24x128xf32>
      %c0_17 = arith.constant 0 : index
      %c0_18 = arith.constant 0 : index
      %36 = vector.load %arg7[%c0_17, %c0_18] : memref<24x128xf32, #tpu.memory_space<vmem>>, vector<24x128xf32>
      tpu.vector_store %arg7[%c0_17, %c0_18], %35 {strides = array<i32>} : memref<24x128xf32, #tpu.memory_space<vmem>>, vector<24x128xf32>,
    } else {
    }
    return
  }
  func.func @transform_0(%arg0: i32, %arg1: i32) -> (i32, i32) {
    %c0_i32 = arith.constant 0 : i32
    %c0_i32_0 = arith.constant 0 : i32
    return %arg0, %c0_i32 : i32, i32
  }
  func.func @transform_1(%arg0: i32, %arg1: i32) -> (i32, i32) {
    %c0_i32 = arith.constant 0 : i32
    %c0_i32_0 = arith.constant 0 : i32
    %c0_i32_1 = arith.constant 0 : i32
    return %c0_i32, %c0_i32_0 : i32, i32
  }
  func.func @transform_2(%arg0: i32, %arg1: i32) -> (i32, i32) {
    %c0_i32 = arith.constant 0 : i32
    %c0_i32_0 = arith.constant 0 : i32
    %c0_i32_1 = arith.constant 0 : i32
    return %c0_i32, %c0_i32_0 : i32, i32
  }
  func.func @transform_3(%arg0: i32, %arg1: i32) -> (i32, i32) {
    %c0_i32 = arith.constant 0 : i32
    %c0_i32_0 = arith.constant 0 : i32
    %c0_i32_1 = arith.constant 0 : i32
    return %c0_i32, %c0_i32_0 : i32, i32
  }
  func.func @transform_4(%arg0: i32, %arg1: i32) -> (i32, i32) {
    %c0_i32 = arith.constant 0 : i32
    %c0_i32_0 = arith.constant 0 : i32
    %c0_i32_1 = arith.constant 0 : i32
    return %c0_i32, %c0_i32_0 : i32, i32
  }
  func.func @transform_5(%arg0: i32, %arg1: i32) -> (i32, i32) {
    %c0_i32 = arith.constant 0 : i32
    %c0_i32_0 = arith.constant 0 : i32
    return %arg0, %c0_i32 : i32, i32
  }
}

</mosaic_0001>

<llo_original>
// kernel: tpu_custom_call.1
$region0: #{tpu_custom_call.1}
  #allocation0 [shape = 'u32[]', space=smem, size = 0x4, offset = 0x4, fixed_abs, tag = 'smem constant byte address 0x4 - core index']
  #allocation1 [shape = 'u32[144,128]{1,0:T(1,128)}', space=vmem, size = 0x12000, scoped, tag = 'internal scratch']
  #allocation2 [shape = 'f32[24,128]{1,0:T(8,128)}', space=vmem, size = 0x3000, scoped, tag = 'scratch operand']
  %s0 = inlined_call_operand.hbm [shape: f32[24,128], index: 0, kind: input, shape index: {}]
  %s1 = inlined_call_operand.hbm [shape: f32[128,512], index: 1, kind: input, shape index: {}]
  %s2 = inlined_call_operand.vmem [shape: f32[1,512], index: 2, kind: input, shape index: {}]
  %s3 = inlined_call_operand.hbm [shape: f32[512,128], index: 3, kind: input, shape index: {}]
  %s4 = inlined_call_operand.vmem [shape: f32[1,128], index: 4, kind: input, shape index: {}]
  %s5 = inlined_call_operand.hbm [shape: f32[24,128], index: 5, kind: output, shape index: {}]
  %s6 = sld [smem:[#allocation0]]
  $region73: #{tpu_custom_call.1} parent=0
    _
  %s8 = ssub.s32 1, %s6
  %s9 = scalar_select 0, %s8, %s6
  $region1: #{tpu_custom_call.1} parent=0
    #allocation3 [shape = 'u8[12288]{0}', space=vmem, size = 0x3000, scoped, tag = 'input window, operand 0, single buffered']
    #allocation4 [shape = 's32[2]{0}', space=sflag, size = 0x8, scoped, tag = 'scoped memory for tpu_custom_call.1']
    #allocation5 [shape = 's32[2]{0}', space=sflag, size = 0x8, scoped, tag = 'scoped memory for tpu_custom_call.1']
    #allocation6 [shape = 'u8[262144]{0}', space=vmem, size = 0x40000, scoped, tag = 'input window, operand 1, single buffered']
    #allocation7 [shape = 's32[1]{0}', space=sflag, size = 0x4, scoped, tag = 'scoped memory for tpu_custom_call.1']
    #allocation8 [shape = 'u8[262144]{0}', space=vmem, size = 0x40000, scoped, tag = 'input window, operand 3, single buffered']
    #allocation9 [shape = 'u8[12288]{0}', space=vmem, size = 0x3000, scoped, tag = 'output window, operand 0, single buffered']
    %10 = vsyncpa [#allocation4], 0
    %11 = vsyncpa [#allocation7], 0
    %12 = vsyncpa [#allocation5], 0
    loop: start=0, step=1, limit=4
    $region2: #{tpu_custom_call.1} parent=1 // loop_pre_header
      _
    $region3: #{tpu_custom_call.1} parent=1 // loop_header
      %s14 = sphi 0, %s18
      %p15 = scmp.ge.s32.totalorder %s14, 4
      %s21 = sphi 0, %s33
      %s22 = sphi 0, %s29
      %s23 = sphi 0, %s21
      %s24 = sphi 0, %s22
      %s25 = sphi 0, %s23
      %s26 = sphi 0, %s24
      %s36 = sphi 0, %s38
      %s39 = sphi 0, %s36
      %s40 = sphi 0, %s39
      %s56 = sphi 0, %s40
      %s60 = sphi 0, %s60
      %s62 = sphi 0, %s60
      %s63 = sphi 0, %s62
      %s77 = sphi 0, %s63
      %s81 = sphi 0, %s81
      %s83 = sphi 0, %s81
      %s84 = sphi 0, %s83
      %s98 = sphi 0, %s84
      %s102 = sphi 0, %s102
      %s104 = sphi 0, %s102
      %s105 = sphi 0, %s104
      %s119 = sphi 0, %s105
      %s123 = sphi 0, %s123
      %s125 = sphi 0, %s123
      %s126 = sphi 0, %s125
      %s140 = sphi 0, %s126
      %s146 = sphi 0, %s148
      %s149 = sphi 0, %s146
      %s150 = sphi 0, %s149
      %s166 = sphi 0, %s150
    $region4: #{tpu_custom_call.1} parent=1 // loop_header_branch
      %17 = sbr.rel (%p15) target = $region8
    $region5: #{tpu_custom_call.1} parent=1 // loop_body
      %s19 = ssub.s32 %s14, 1
      %s20 = ssub.s32 %s14, 2
      %s27 = sadd.s32 1, %s22
      %p28 = scmp.ge.s32.totalorder %s27, 2
      %s29 = scalar_select %p28, 0, %s27
      %s30 = sadd.s32 1, %s21
      %s31 = scalar_select %p28, %s30, %s21
      %p32 = scmp.ge.s32.totalorder %s31, 1
      %s33 = scalar_select %p32, 0, %s31
      %s34 = ssub.s32 %s21, %s33
      %p35 = scmp.eq.s32.totalorder %s34, 0
      %s37 = sadd.s32 %s36, 1
      %s38 = scalar_select %p35, %s36, %s37
      %p41 = pneg %p35
      %p42 = scmp.eq.s32.totalorder %s14, 1
      %p43 = por %p41, %p42
      %p44 = scmp.ne.s32.totalorder %s36, %s39
      %p45 = scmp.eq.s32.totalorder %s14, 0
      %p46 = por %p44, %p45
      %p47 = scmp.ne.s32.totalorder %s36, %s39
      %p48 = scmp.eq.s32.totalorder %s19, 1
      %p49 = por %p47, %p48
      %p50 = scmp.ne.s32.totalorder %s39, %s40
      %p51 = scmp.eq.s32.totalorder %s19, 0
      %p52 = por %p50, %p51
      %p53 = scmp.ne.s32.totalorder %s39, %s40
      %p54 = scmp.eq.s32.totalorder %s20, 1
      %p55 = por %p53, %p54
      %p57 = scmp.ne.s32.totalorder %s40, %s56
      %p58 = scmp.eq.s32.totalorder %s20, 0
      %p59 = por %p57, %p58
      %s61 = sadd.s32 %s60, 1
      %p64 = scmp.eq.s32.totalorder %s14, 1
      %p65 = scmp.ne.s32.totalorder %s60, %s62
      %p66 = scmp.eq.s32.totalorder %s14, 0
      %p67 = por %p65, %p66
      %p68 = scmp.ne.s32.totalorder %s60, %s62
      %p69 = scmp.eq.s32.totalorder %s19, 1
      %p70 = por %p68, %p69
      %p71 = scmp.ne.s32.totalorder %s62, %s63
      %p72 = scmp.eq.s32.totalorder %s19, 0
      %p73 = por %p71, %p72
      %p74 = scmp.ne.s32.totalorder %s62, %s63
      %p75 = scmp.eq.s32.totalorder %s20, 1
      %p76 = por %p74, %p75
      %p78 = scmp.ne.s32.totalorder %s63, %s77
      %p79 = scmp.eq.s32.totalorder %s20, 0
      %p80 = por %p78, %p79
      %s82 = sadd.s32 %s81, 1
      %p85 = scmp.eq.s32.totalorder %s14, 1
      %p86 = scmp.ne.s32.totalorder %s81, %s83
      %p87 = scmp.eq.s32.totalorder %s14, 0
      %p88 = por %p86, %p87
      %p89 = scmp.ne.s32.totalorder %s81, %s83
      %p90 = scmp.eq.s32.totalorder %s19, 1
      %p91 = por %p89, %p90
      %p92 = scmp.ne.s32.totalorder %s83, %s84
      %p93 = scmp.eq.s32.totalorder %s19, 0
      %p94 = por %p92, %p93
      %p95 = scmp.ne.s32.totalorder %s83, %s84
      %p96 = scmp.eq.s32.totalorder %s20, 1
      %p97 = por %p95, %p96
      %p99 = scmp.ne.s32.totalorder %s84, %s98
      %p100 = scmp.eq.s32.totalorder %s20, 0
      %p101 = por %p99, %p100
      %s103 = sadd.s32 %s102, 1
      %p106 = scmp.eq.s32.totalorder %s14, 1
      %p107 = scmp.ne.s32.totalorder %s102, %s104
      %p108 = scmp.eq.s32.totalorder %s14, 0
      %p109 = por %p107, %p108
      %p110 = scmp.ne.s32.totalorder %s102, %s104
      %p111 = scmp.eq.s32.totalorder %s19, 1
      %p112 = por %p110, %p111
      %p113 = scmp.ne.s32.totalorder %s104, %s105
      %p114 = scmp.eq.s32.totalorder %s19, 0
      %p115 = por %p113, %p114
      %p116 = scmp.ne.s32.totalorder %s104, %s105
      %p117 = scmp.eq.s32.totalorder %s20, 1
      %p118 = por %p116, %p117
      %p120 = scmp.ne.s32.totalorder %s105, %s119
      %p121 = scmp.eq.s32.totalorder %s20, 0
      %p122 = por %p120, %p121
      %s124 = sadd.s32 %s123, 1
      %p127 = scmp.eq.s32.totalorder %s14, 1
      %p128 = scmp.ne.s32.totalorder %s123, %s125
      %p129 = scmp.eq.s32.totalorder %s14, 0
      %p130 = por %p128, %p129
      %p131 = scmp.ne.s32.totalorder %s123, %s125
      %p132 = scmp.eq.s32.totalorder %s19, 1
      %p133 = por %p131, %p132
      %p134 = scmp.ne.s32.totalorder %s125, %s126
      %p135 = scmp.eq.s32.totalorder %s19, 0
      %p136 = por %p134, %p135
      %p137 = scmp.ne.s32.totalorder %s125, %s126
      %p138 = scmp.eq.s32.totalorder %s20, 1
      %p139 = por %p137, %p138
      %p141 = scmp.ne.s32.totalorder %s126, %s140
      %p142 = scmp.eq.s32.totalorder %s20, 0
      %p143 = por %p141, %p142
      %s144 = ssub.s32 %s21, %s33
      %p145 = scmp.eq.s32.totalorder %s144, 0
      %s147 = sadd.s32 %s146, 1
      %s148 = scalar_select %p145, %s146, %s147
      %p151 = pneg %p145
      %p152 = scmp.eq.s32.totalorder %s14, 1
      %p153 = por %p151, %p152
      %p154 = scmp.ne.s32.totalorder %s146, %s149
      %p155 = scmp.eq.s32.totalorder %s14, 0
      %p156 = por %p154, %p155
      %p157 = scmp.ne.s32.totalorder %s146, %s149
      %p158 = scmp.eq.s32.totalorder %s19, 1
      %p159 = por %p157, %p158
      %p160 = scmp.ne.s32.totalorder %s149, %s150
      %p161 = scmp.eq.s32.totalorder %s19, 0
      %p162 = por %p160, %p161
      %p163 = scmp.ne.s32.totalorder %s149, %s150
      %p164 = scmp.eq.s32.totalorder %s20, 1
      %p165 = por %p163, %p164
      %p167 = scmp.ne.s32.totalorder %s150, %s166
      %p168 = scmp.eq.s32.totalorder %s20, 0
      %p169 = por %p167, %p168
      %p170 = scmp.le.s32.totalorder 1, %s14
      %p171 = scmp.lt.s32.totalorder %s14, 3
      %p172 = pnand %p170, %p171
      %p173 = pneg %p172
      // Predicated region
      $region9: #{tpu_custom_call.1} parent=5 // pred_check
        _
      $region10: #{tpu_custom_call.1} parent=5 // pred_check_branch
        %175 = sbr.rel (%p172) target = $region12
      $region11: #{tpu_custom_call.1} parent=5 // pred_region
        %s176 = ssub.s32 %s14, 1
        // Predicated region
        $region13: #{tpu_custom_call.1} parent=11 // pred_check
          %p177 = pneg %p52
        $region14: #{tpu_custom_call.1} parent=11 // pred_check_branch
          %179 = sbr.rel (%p177) target = $region16
        $region15: #{tpu_custom_call.1} parent=11 // pred_region
          %s180 = smul.u32 3, %s23
          %s182 = ssub.s32 384, 384
          %183 = vsyncadd [#allocation4], %s182
          %s184 = smul.addr %s180, 128
          %s185 = scalar_lea.hbm %s0, %s184
          %s186 = sshll.u32 [#allocation3], 4
          %s187 = int_to_ptr.vmem [resolvable:$true] %s186
          %192 = dma.hbm_to_vmem [thread:$0]  %s185, 384, %s187, [#allocation4], 128, 128, 8
        $region16: #{tpu_custom_call.1} parent=11 // pred_fallthru
          _
        // Predicated region
        $region17: #{tpu_custom_call.1} parent=11 // pred_check
          %p193 = pneg %p73
        $region18: #{tpu_custom_call.1} parent=11 // pred_check_branch
          %195 = sbr.rel (%p193) target = $region20
        $region19: #{tpu_custom_call.1} parent=11 // pred_region
          %s197 = ssub.s32 8192, 8192
          %198 = vsyncadd [#allocation7], %s197
          %s199 = sshll.u32 [#allocation6], 4
          %s200 = int_to_ptr.vmem [resolvable:$true] %s199
          %205 = dma.hbm_to_vmem [thread:$0]  %s1, 8192, %s200, [#allocation7], 512, 512, 32
        $region20: #{tpu_custom_call.1} parent=11 // pred_fallthru
          _
        // Predicated region
        $region21: #{tpu_custom_call.1} parent=11 // pred_check
          %p206 = pneg %p94
        $region22: #{tpu_custom_call.1} parent=11 // pred_check_branch
          %208 = sbr.rel (%p206) target = $region24
        $region23: #{tpu_custom_call.1} parent=11 // pred_region
          _
        $region24: #{tpu_custom_call.1} parent=11 // pred_fallthru
          _
        // Predicated region
        $region25: #{tpu_custom_call.1} parent=11 // pred_check
          %p209 = pneg %p115
        $region26: #{tpu_custom_call.1} parent=11 // pred_check_branch
          %211 = sbr.rel (%p209) target = $region28
        $region27: #{tpu_custom_call.1} parent=11 // pred_region
          %s213 = ssub.s32 8192, 8192
          %214 = vsyncadd [#allocation7], %s213
          %s215 = sshll.u32 [#allocation8], 4
          %s216 = int_to_ptr.vmem [resolvable:$true] %s215
          %221 = dma.hbm_to_vmem [thread:$0]  %s3, 8192, %s216, [#allocation7], 128, 128, 8
        $region28: #{tpu_custom_call.1} parent=11 // pred_fallthru
          _
        // Predicated region
        $region29: #{tpu_custom_call.1} parent=11 // pred_check
          %p222 = pneg %p136
        $region30: #{tpu_custom_call.1} parent=11 // pred_check_branch
          %224 = sbr.rel (%p222) target = $region32
        $region31: #{tpu_custom_call.1} parent=11 // pred_region
          _
        $region32: #{tpu_custom_call.1} parent=11 // pred_fallthru
          _
      $region12: #{tpu_custom_call.1} parent=5 // pred_fallthru
        _
      %p225 = scmp.lt.s32.totalorder %s14, 2
      // Predicated region
      $region33: #{tpu_custom_call.1} parent=5 // pred_check
        %p226 = pneg %p225
      $region34: #{tpu_custom_call.1} parent=5 // pred_check_branch
        %228 = sbr.rel (%p226) target = $region36
      $region35: #{tpu_custom_call.1} parent=5 // pred_region
        _
      $region36: #{tpu_custom_call.1} parent=5 // pred_fallthru
        _
      %p229 = scmp.le.s32.totalorder 1, %s14
      %p230 = scmp.lt.s32.totalorder %s14, 3
      %p231 = pnand %p229, %p230
      %p232 = pneg %p231
      // Predicated region
      $region37: #{tpu_custom_call.1} parent=5 // pred_check
        _
      $region38: #{tpu_custom_call.1} parent=5 // pred_check_branch
        %234 = sbr.rel (%p231) target = $region40
      $region39: #{tpu_custom_call.1} parent=5 // pred_region
        %s235 = ssub.s32 %s14, 1
        // Predicated region
        $region41: #{tpu_custom_call.1} parent=39 // pred_check
          %p236 = pneg %p52
        $region42: #{tpu_custom_call.1} parent=39 // pred_check_branch
          %238 = sbr.rel (%p236) target = $region44
        $region43: #{tpu_custom_call.1} parent=39 // pred_region
          %239 = dma.done [#allocation4], 384
        $region44: #{tpu_custom_call.1} parent=39 // pred_fallthru
          _
        // Predicated region
        $region45: #{tpu_custom_call.1} parent=39 // pred_check
          %p240 = pneg %p73
        $region46: #{tpu_custom_call.1} parent=39 // pred_check_branch
          %242 = sbr.rel (%p240) target = $region48
        $region47: #{tpu_custom_call.1} parent=39 // pred_region
          %243 = dma.done [#allocation7], 8192
        $region48: #{tpu_custom_call.1} parent=39 // pred_fallthru
          _
        // Predicated region
        $region49: #{tpu_custom_call.1} parent=39 // pred_check
          %p244 = pneg %p115
        $region50: #{tpu_custom_call.1} parent=39 // pred_check_branch
          %246 = sbr.rel (%p244) target = $region52
        $region51: #{tpu_custom_call.1} parent=39 // pred_region
          %247 = dma.done [#allocation7], 8192
        $region52: #{tpu_custom_call.1} parent=39 // pred_fallthru
          _
        %p248 = pneg %p52
        %p249 = pneg %p49
        %p250 = pneg %p73
        %p251 = pneg %p70
        %p252 = pneg %p94
        %p253 = pneg %p91
        %p254 = pneg %p115
        %p255 = pneg %p112
        %p256 = pneg %p136
        %p257 = pneg %p133
        %p258 = pneg %p162
        %p259 = pneg %p159
        %s260 = smul.u32 3, %s23
        %s261 = smul.u32 3, %s23
        %p262 = scmp.eq.s32.totalorder %s24, 0
        // Predicated region
        $region53: #{tpu_custom_call.1} parent=39 // pred_check
          %p263 = pneg %p262
        $region54: #{tpu_custom_call.1} parent=39 // pred_check_branch
          %265 = sbr.rel (%p263) target = $region56
        $region55: #{tpu_custom_call.1} parent=39 // pred_region
          %v266 = vld [vmem:[%s4] sm:$0x1]
          %v268 = vlaneseq
          %v269 = vshrl.u32 %v268, 7
          %v270 = vsub.s32 0, %v269
          %v271 = vrot.slane %v266, %v270
          %273 = vst [vmem:[#allocation2] sm:$0xff] %v271
          %274 = vst [vmem:[#allocation2 + $0x8] sm:$0xff] %v271
          %275 = vst [vmem:[#allocation2 + $0x10] sm:$0xff] %v271
        $region56: #{tpu_custom_call.1} parent=39 // pred_fallthru
          _
        %s276 = smul.u32 %s24, 256
        %s277 = sshra.s32 %s276, 7
        %s278 = sand.u32 %s276, 127
        %s279 = smul.addr %s277, 8
        %s280 = scalar_lea.vmem [#allocation6], %s279
        %v281 = vld [vmem:[%s280] sm:$0xff]
        %v282 = vld [vmem:[%s280 + $0x8] sm:$0xff]
        %v283 = vld [vmem:[%s280 + $0x20] sm:$0xff]
        %v284 = vld [vmem:[%s280 + $0x28] sm:$0xff]
        %v285 = vld [vmem:[%s280 + $0x40] sm:$0xff]
        %v286 = vld [vmem:[%s280 + $0x48] sm:$0xff]
        %v287 = vld [vmem:[%s280 + $0x60] sm:$0xff]
        %v288 = vld [vmem:[%s280 + $0x68] sm:$0xff]
        %v289 = vld [vmem:[%s280 + $0x80] sm:$0xff]
        %v290 = vld [vmem:[%s280 + $0x88] sm:$0xff]
        %v291 = vld [vmem:[%s280 + $0xa0] sm:$0xff]
        %v292 = vld [vmem:[%s280 + $0xa8] sm:$0xff]
        %v293 = vld [vmem:[%s280 + $0xc0] sm:$0xff]
        %v294 = vld [vmem:[%s280 + $0xc8] sm:$0xff]
        %v295 = vld [vmem:[%s280 + $0xe0] sm:$0xff]
        %v296 = vld [vmem:[%s280 + $0xe8] sm:$0xff]
        %v297 = vld [vmem:[%s280 + $0x100] sm:$0xff]
        %v298 = vld [vmem:[%s280 + $0x108] sm:$0xff]
        %v299 = vld [vmem:[%s280 + $0x120] sm:$0xff]
        %v300 = vld [vmem:[%s280 + $0x128] sm:$0xff]
        %v301 = vld [vmem:[%s280 + $0x140] sm:$0xff]
        %v302 = vld [vmem:[%s280 + $0x148] sm:$0xff]
        %v303 = vld [vmem:[%s280 + $0x160] sm:$0xff]
        %v304 = vld [vmem:[%s280 + $0x168] sm:$0xff]
        %v305 = vld [vmem:[%s280 + $0x180] sm:$0xff]
        %v306 = vld [vmem:[%s280 + $0x188] sm:$0xff]
        %v307 = vld [vmem:[%s280 + $0x1a0] sm:$0xff]
        %v308 = vld [vmem:[%s280 + $0x1a8] sm:$0xff]
        %v309 = vld [vmem:[%s280 + $0x1c0] sm:$0xff]
        %v310 = vld [vmem:[%s280 + $0x1c8] sm:$0xff]
        %v311 = vld [vmem:[%s280 + $0x1e0] sm:$0xff]
        %v312 = vld [vmem:[%s280 + $0x1e8] sm:$0xff]
        %s313 = scalar_lea.vmem %s2, %s277
        %v314 = vld [vmem:[%s313] sm:$0x3]
        %s315 = scalar_lea.vmem [#allocation8], %s276
        %v316 = vld [vmem:[%s315] sm:$0xff]
        %v317 = vld [vmem:[%s315 + $0x8] sm:$0xff]
        %v318 = vld [vmem:[%s315 + $0x10] sm:$0xff]
        %v319 = vld [vmem:[%s315 + $0x18] sm:$0xff]
        %v320 = vld [vmem:[%s315 + $0x20] sm:$0xff]
        %v321 = vld [vmem:[%s315 + $0x28] sm:$0xff]
        %v322 = vld [vmem:[%s315 + $0x30] sm:$0xff]
        %v323 = vld [vmem:[%s315 + $0x38] sm:$0xff]
        %v324 = vld [vmem:[%s315 + $0x40] sm:$0xff]
        %v325 = vld [vmem:[%s315 + $0x48] sm:$0xff]
        %v326 = vld [vmem:[%s315 + $0x50] sm:$0xff]
        %v327 = vld [vmem:[%s315 + $0x58] sm:$0xff]
        %v328 = vld [vmem:[%s315 + $0x60] sm:$0xff]
        %v329 = vld [vmem:[%s315 + $0x68] sm:$0xff]
        %v330 = vld [vmem:[%s315 + $0x70] sm:$0xff]
        %v331 = vld [vmem:[%s315 + $0x78] sm:$0xff]
        %v332 = vld [vmem:[%s315 + $0x80] sm:$0xff]
        %v333 = vld [vmem:[%s315 + $0x88] sm:$0xff]
        %v334 = vld [vmem:[%s315 + $0x90] sm:$0xff]
        %v335 = vld [vmem:[%s315 + $0x98] sm:$0xff]
        %v336 = vld [vmem:[%s315 + $0xa0] sm:$0xff]
        %v337 = vld [vmem:[%s315 + $0xa8] sm:$0xff]
        %v338 = vld [vmem:[%s315 + $0xb0] sm:$0xff]
        %v339 = vld [vmem:[%s315 + $0xb8] sm:$0xff]
        %v340 = vld [vmem:[%s315 + $0xc0] sm:$0xff]
        %v341 = vld [vmem:[%s315 + $0xc8] sm:$0xff]
        %v342 = vld [vmem:[%s315 + $0xd0] sm:$0xff]
        %v343 = vld [vmem:[%s315 + $0xd8] sm:$0xff]
        %v344 = vld [vmem:[%s315 + $0xe0] sm:$0xff]
        %v345 = vld [vmem:[%s315 + $0xe8] sm:$0xff]
        %v346 = vld [vmem:[%s315 + $0xf0] sm:$0xff]
        %v347 = vld [vmem:[%s315 + $0xf8] sm:$0xff]
        %v348 = vld [vmem:[#allocation3] sm:$0xff]
        %v349 = vld [vmem:[#allocation3 + $0x8] sm:$0xff]
        %v350 = vld [vmem:[#allocation3 + $0x10] sm:$0xff]
        %v352 = vlaneseq
        %v353 = vshrl.u32 %v352, 7
        %v354 = vsub.s32 0, %v353
        %v355 = vrot.slane %v314, %v354
        %v356 = vlaneseq
        %v357 = vshrl.u32 %v356, 7
        %v358 = vsub.s32 1, %v357
        %v359 = vrot.slane %v314, %v358
        %362 = vmatprep.subr.mxu0 %v282
        %363 = vmatpush1.msra.mxu0 %v281
        %364 = vmatprep.subr.mxu0 %v284
        %365 = vmatpush1.msra.mxu0 %v283
        %366 = vmatprep.subr.mxu0 %v286
        %367 = vmatpush1.msra.mxu0 %v285
        %368 = vmatprep.subr.mxu0 %v288
        %369 = vmatpush1.msra.mxu0 %v287
        %370 = vmatprep.subr.mxu0 %v290
        %371 = vmatpush1.msra.mxu0 %v289
        %372 = vmatprep.subr.mxu0 %v292
        %373 = vmatpush1.msra.mxu0 %v291
        %374 = vmatprep.subr.mxu0 %v294
        %375 = vmatpush1.msra.mxu0 %v293
        %376 = vmatprep.subr.mxu0 %v296
        %377 = vmatpush1.msra.mxu0 %v295
        %378 = vmatprep.subr.mxu0 %v298
        %379 = vmatpush1.msra.mxu0 %v297
        %380 = vmatprep.subr.mxu0 %v300
        %381 = vmatpush1.msra.mxu0 %v299
        %382 = vmatprep.subr.mxu0 %v302
        %383 = vmatpush1.msra.mxu0 %v301
        %384 = vmatprep.subr.mxu0 %v304
        %385 = vmatpush1.msra.mxu0 %v303
        %386 = vmatprep.subr.mxu0 %v306
        %387 = vmatpush1.msra.mxu0 %v305
        %388 = vmatprep.subr.mxu0 %v308
        %389 = vmatpush1.msra.mxu0 %v307
        %390 = vmatprep.subr.mxu0 %v310
        %391 = vmatpush1.msra.mxu0 %v309
        %392 = vmatprep.subr.mxu0 %v312
        %393 = vmatpush1.msra.mxu0 %v311
        %394 = vmatprep.subr.mxu0 0.0
        %395 = vmatpush1.msra.mxu0 0.0
        %396 = vmatprep.subr.mxu0 0.0
        %397 = vmatpush1.msra.mxu0 0.0
        %398 = vmatprep.subr.mxu0 0.0
        %399 = vmatpush1.msra.mxu0 0.0
        %400 = vmatprep.subr.mxu0 0.0
        %401 = vmatpush1.msra.mxu0 0.0
        %402 = vmatprep.subr.mxu0 0.0
        %403 = vmatpush1.msra.mxu0 0.0
        %404 = vmatprep.subr.mxu0 0.0
        %405 = vmatpush1.msra.mxu0 0.0
        %406 = vmatprep.subr.mxu0 0.0
        %407 = vmatpush1.msra.mxu0 0.0
        %408 = vmatprep.subr.mxu0 0.0
        %409 = vmatpush1.msra.mxu0 0.0
        %410 = vmatprep.subr.mxu0 0.0
        %411 = vmatpush1.msra.mxu0 0.0
        %412 = vmatprep.subr.mxu0 0.0
        %413 = vmatpush1.msra.mxu0 0.0
        %414 = vmatprep.subr.mxu0 0.0
        %415 = vmatpush1.msra.mxu0 0.0
        %416 = vmatprep.subr.mxu0 0.0
        %417 = vmatpush1.msra.mxu0 0.0
        %418 = vmatprep.subr.mxu0 0.0
        %419 = vmatpush1.msra.mxu0 0.0
        %420 = vmatprep.subr.mxu0 0.0
        %421 = vmatpush1.msra.mxu0 0.0
        %422 = vmatprep.subr.mxu0 0.0
        %423 = vmatpush1.msra.mxu0 0.0
        %424 = vmatprep.subr.mxu0 0.0
        %425 = vmatpush1.msra.mxu0 0.0
        %426 = vmatprep.mubr.f32.mxu0 0.0
        %427 = vmatmul.mubr.f32.gmra.mrb[0].mxu0 %v348
        %v428 = vpop.f32.mrb[0].mxu0
        %v429 = vadd.f32 %v355, %v428
        %v430 = vpop.f32.mrb[0].mxu0
        %v431 = vadd.f32 %v359, %v430
        %432 = vmatprep.mubr.f32.mxu0 0.0
        %433 = vmatmul.mubr.f32.gmra.mrb[0].mxu0 %v349
        %v434 = vpop.f32.mrb[0].mxu0
        %v435 = vadd.f32 %v355, %v434
        %v436 = vpop.f32.mrb[0].mxu0
        %v437 = vadd.f32 %v359, %v436
        %438 = vmatprep.mubr.f32.mxu0 0.0
        %439 = vmatmul.mubr.f32.gmra.mrb[0].mxu0 %v350
        %v440 = vpop.f32.mrb[0].mxu0
        %v441 = vadd.f32 %v355, %v440
        %v442 = vpop.f32.mrb[0].mxu0
        %v443 = vadd.f32 %v359, %v442
        %444 = vdwg.mxu0
        %v445 = vmul.f32 %v429, 0.5
        %v446 = vmul.f32 %v431, 0.5
        %v447 = vmul.f32 %v435, 0.5
        %v448 = vmul.f32 %v437, 0.5
        %v449 = vmul.f32 %v441, 0.5
        %v450 = vmul.f32 %v443, 0.5
        %v451 = vmul.f32 %v429, 0.044715
        %v452 = vmul.f32 %v431, 0.044715
        %v453 = vmul.f32 %v435, 0.044715
        %v454 = vmul.f32 %v437, 0.044715
        %v455 = vmul.f32 %v441, 0.044715
        %v456 = vmul.f32 %v443, 0.044715
        %v457 = vmul.f32 %v451, %v429
        %v458 = vmul.f32 %v452, %v431
        %v459 = vmul.f32 %v453, %v435
        %v460 = vmul.f32 %v454, %v437
        %v461 = vmul.f32 %v455, %v441
        %v462 = vmul.f32 %v456, %v443
        %v463 = vmul.f32 %v457, %v429
        %v464 = vmul.f32 %v458, %v431
        %v465 = vmul.f32 %v459, %v435
        %v466 = vmul.f32 %v460, %v437
        %v467 = vmul.f32 %v461, %v441
        %v468 = vmul.f32 %v462, %v443
        %v469 = vadd.f32 %v429, %v463
        %v470 = vadd.f32 %v431, %v464
        %v471 = vadd.f32 %v435, %v465
        %v472 = vadd.f32 %v437, %v466
        %v473 = vadd.f32 %v441, %v467
        %v474 = vadd.f32 %v443, %v468
        %v475 = vmul.f32 %v469, 0.7978846
        %v476 = vmul.f32 %v470, 0.7978846
        %v477 = vmul.f32 %v471, 0.7978846
        %v478 = vmul.f32 %v472, 0.7978846
        %v479 = vmul.f32 %v473, 0.7978846
        %v480 = vmul.f32 %v474, 0.7978846
        %v481 = vtanh.pop %v475
        %v482 = vtanh.pop %v476
        %v483 = vtanh.pop %v477
        %v484 = vtanh.pop %v478
        %v485 = vtanh.pop %v479
        %v486 = vtanh.pop %v480
        %v487 = vadd.f32 %v481, 1.0
        %v488 = vadd.f32 %v482, 1.0
        %v489 = vadd.f32 %v483, 1.0
        %v490 = vadd.f32 %v484, 1.0
        %v491 = vadd.f32 %v485, 1.0
        %v492 = vadd.f32 %v486, 1.0
        %v493 = vmul.f32 %v445, %v487
        %v494 = vmul.f32 %v446, %v488
        %v495 = vmul.f32 %v447, %v489
        %v496 = vmul.f32 %v448, %v490
        %v497 = vmul.f32 %v449, %v491
        %v498 = vmul.f32 %v450, %v492
        %v499 = vld [vmem:[#allocation2] sm:$0xff]
        %v500 = vld [vmem:[#allocation2 + $0x8] sm:$0xff]
        %v501 = vld [vmem:[#allocation2 + $0x10] sm:$0xff]
        %502 = vmatprep.subr.mxu0 0.0
        %503 = vmatpush1.msra.mxu0 %v316
        %504 = vmatprep.subr.mxu0 0.0
        %505 = vmatpush1.msra.mxu0 %v317
        %506 = vmatprep.subr.mxu0 0.0
        %507 = vmatpush1.msra.mxu0 %v318
        %508 = vmatprep.subr.mxu0 0.0
        %509 = vmatpush1.msra.mxu0 %v319
        %510 = vmatprep.subr.mxu0 0.0
        %511 = vmatpush1.msra.mxu0 %v320
        %512 = vmatprep.subr.mxu0 0.0
        %513 = vmatpush1.msra.mxu0 %v321
        %514 = vmatprep.subr.mxu0 0.0
        %515 = vmatpush1.msra.mxu0 %v322
        %516 = vmatprep.subr.mxu0 0.0
        %517 = vmatpush1.msra.mxu0 %v323
        %518 = vmatprep.subr.mxu0 0.0
        %519 = vmatpush1.msra.mxu0 %v324
        %520 = vmatprep.subr.mxu0 0.0
        %521 = vmatpush1.msra.mxu0 %v325
        %522 = vmatprep.subr.mxu0 0.0
        %523 = vmatpush1.msra.mxu0 %v326
        %524 = vmatprep.subr.mxu0 0.0
        %525 = vmatpush1.msra.mxu0 %v327
        %526 = vmatprep.subr.mxu0 0.0
        %527 = vmatpush1.msra.mxu0 %v328
        %528 = vmatprep.subr.mxu0 0.0
        %529 = vmatpush1.msra.mxu0 %v329
        %530 = vmatprep.subr.mxu0 0.0
        %531 = vmatpush1.msra.mxu0 %v330
        %532 = vmatprep.subr.mxu0 0.0
        %533 = vmatpush1.msra.mxu0 %v331
        %534 = vmatprep.subr.mxu0 0.0
        %535 = vmatpush1.msra.mxu0 %v332
        %536 = vmatprep.subr.mxu0 0.0
        %537 = vmatpush1.msra.mxu0 %v333
        %538 = vmatprep.subr.mxu0 0.0
        %539 = vmatpush1.msra.mxu0 %v334
        %540 = vmatprep.subr.mxu0 0.0
        %541 = vmatpush1.msra.mxu0 %v335
        %542 = vmatprep.subr.mxu0 0.0
        %543 = vmatpush1.msra.mxu0 %v336
        %544 = vmatprep.subr.mxu0 0.0
        %545 = vmatpush1.msra.mxu0 %v337
        %546 = vmatprep.subr.mxu0 0.0
        %547 = vmatpush1.msra.mxu0 %v338
        %548 = vmatprep.subr.mxu0 0.0
        %549 = vmatpush1.msra.mxu0 %v339
        %550 = vmatprep.subr.mxu0 0.0
        %551 = vmatpush1.msra.mxu0 %v340
        %552 = vmatprep.subr.mxu0 0.0
        %553 = vmatpush1.msra.mxu0 %v341
        %554 = vmatprep.subr.mxu0 0.0
        %555 = vmatpush1.msra.mxu0 %v342
        %556 = vmatprep.subr.mxu0 0.0
        %557 = vmatpush1.msra.mxu0 %v343
        %558 = vmatprep.subr.mxu0 0.0
        %559 = vmatpush1.msra.mxu0 %v344
        %560 = vmatprep.subr.mxu0 0.0
        %561 = vmatpush1.msra.mxu0 %v345
        %562 = vmatprep.subr.mxu0 0.0
        %563 = vmatpush1.msra.mxu0 %v346
        %564 = vmatprep.subr.mxu0 0.0
        %565 = vmatpush1.msra.mxu0 %v347
        %566 = vmatprep.mubr.f32.mxu0 %v494
        %567 = vmatmul.mubr.f32.gmra.mrb[0].mxu0 %v493
        %v568 = vpop.f32.mrb[0].mxu0
        %v569 = vadd.f32 0.0, %v568
        %v570 = vpop.f32.mrb[0].mxu0
        %571 = vmatprep.mubr.f32.mxu0 %v496
        %572 = vmatmul.mubr.f32.gmra.mrb[0].mxu0 %v495
        %v573 = vpop.f32.mrb[0].mxu0
        %v574 = vadd.f32 0.0, %v573
        %v575 = vpop.f32.mrb[0].mxu0
        %576 = vmatprep.mubr.f32.mxu0 %v498
        %577 = vmatmul.mubr.f32.gmra.mrb[0].mxu0 %v497
        %v578 = vpop.f32.mrb[0].mxu0
        %v579 = vadd.f32 0.0, %v578
        %v580 = vpop.f32.mrb[0].mxu0
        %581 = vdwg.mxu0
        %v582 = vadd.f32 %v499, %v569
        %v583 = vadd.f32 %v500, %v574
        %v584 = vadd.f32 %v501, %v579
        %585 = vst [vmem:[#allocation2] sm:$0xff] %v582
        %586 = vst [vmem:[#allocation2 + $0x8] sm:$0xff] %v583
        %587 = vst [vmem:[#allocation2 + $0x10] sm:$0xff] %v584
        %p588 = scmp.eq.s32.totalorder %s24, 1
        // Predicated region
        $region57: #{tpu_custom_call.1} parent=39 // pred_check
          %p589 = pneg %p588
        $region58: #{tpu_custom_call.1} parent=39 // pred_check_branch
          %591 = sbr.rel (%p589) target = $region60
        $region59: #{tpu_custom_call.1} parent=39 // pred_region
          %v592 = vld [vmem:[#allocation2] sm:$0xff]
          %v593 = vld [vmem:[#allocation2 + $0x8] sm:$0xff]
          %v594 = vld [vmem:[#allocation2 + $0x10] sm:$0xff]
          %595 = vst [vmem:[#allocation9] sm:$0xff] %v592
          %596 = vst [vmem:[#allocation9 + $0x8] sm:$0xff] %v593
          %597 = vst [vmem:[#allocation9 + $0x10] sm:$0xff] %v594
        $region60: #{tpu_custom_call.1} parent=39 // pred_fallthru
          _
        // Predicated region
        $region61: #{tpu_custom_call.1} parent=39 // pred_check
          %p598 = pneg %p159
        $region62: #{tpu_custom_call.1} parent=39 // pred_check_branch
          %600 = sbr.rel (%p598) target = $region64
        $region63: #{tpu_custom_call.1} parent=39 // pred_region
          %s601 = smul.u32 3, %s23
          %s603 = ssub.s32 384, 384
          %604 = vsyncadd [#allocation5], %s603
          %s605 = smul.addr %s601, 128
          %s606 = scalar_lea.hbm %s5, %s605
          %s607 = sshll.u32 [#allocation9], 4
          %s608 = int_to_ptr.vmem [resolvable:$true] %s607
          %613 = dma.vmem_to_hbm [thread:$0]  %s608, 384, %s606, [#allocation5], 128, 128, 8
        $region64: #{tpu_custom_call.1} parent=39 // pred_fallthru
          _
        // Predicated region
        $region65: #{tpu_custom_call.1} parent=39 // pred_check
          %p614 = pneg %p159
        $region66: #{tpu_custom_call.1} parent=39 // pred_check_branch
          %616 = sbr.rel (%p614) target = $region68
        $region67: #{tpu_custom_call.1} parent=39 // pred_region
          %617 = dma.done [#allocation5], 384
        $region68: #{tpu_custom_call.1} parent=39 // pred_fallthru
          _
      $region40: #{tpu_custom_call.1} parent=5 // pred_fallthru
        _
      %p618 = scmp.le.s32.totalorder 2, %s14
      // Predicated region
      $region69: #{tpu_custom_call.1} parent=5 // pred_check
        %p619 = pneg %p618
      $region70: #{tpu_custom_call.1} parent=5 // pred_check_branch
        %621 = sbr.rel (%p619) target = $region72
      $region71: #{tpu_custom_call.1} parent=5 // pred_region
        %s622 = ssub.s32 %s14, 2
      $region72: #{tpu_custom_call.1} parent=5 // pred_fallthru
        _
    $region6: #{tpu_custom_call.1} parent=1 // loop_footer
      %s18 = sadd.s32 1, %s14
    $region7: #{tpu_custom_call.1} parent=1 // loop_footer_branch
      %13 = sbr.rel target = $region3
    $region8: #{tpu_custom_call.1} parent=1 // loop_exit
      _
    %623 = vsyncpa [#allocation4], 1
    %s624 = scalar_lea.sflag [#allocation4], 1
    %625 = vsyncpa %s624, 1
    %626 = vsyncpa [#allocation7], 1
    %627 = vsyncpa [#allocation5], 1
    %s628 = scalar_lea.sflag [#allocation5], 1
    %629 = vsyncpa %s628, 1

</llo_original>
